<compile_context>
chip_gen: v5e
topology: v5e:2x2
jax: 0.10.0
libtpu: 0.0.40
codegen_flags: <defaults>
</compile_context>

<pallas_src>
import functools

import jax
import jax.numpy as jnp
from jax.experimental import pallas as pl
from jax.experimental.pallas import tpu as pltpu


def _distill_kl_kernel(ys_ref, yt_ref, out_ref, acc_ref, *, T: float,
                       batch: int, tile_b: int):
    i = pl.program_id(0)

    @pl.when(i == 0)
    def _init():
        acc_ref[0] = jnp.float32(0.0)

    inv_T = 1.0 / T

    # Student: only log Z_s is needed (numerically stable, f32 accum).
    ys = ys_ref[...].astype(jnp.float32) * inv_T
    ys_shift = ys - jnp.max(ys, axis=1, keepdims=True)
    log_z_s = jnp.log(jnp.sum(jnp.exp(ys_shift), axis=1, keepdims=True))

    # Teacher softmax at temperature T.
    yt = yt_ref[...].astype(jnp.float32) * inv_T
    yt_shift = yt - jnp.max(yt, axis=1, keepdims=True)
    exp_t = jnp.exp(yt_shift)
    z_t = jnp.sum(exp_t, axis=1, keepdims=True)
    p_t = exp_t * pl.reciprocal(z_t, approx=False)   # divide -> EUP reciprocal
    log_z_t = jnp.log(z_t)

    # Per-row KL:  sum_c p_t*(log p_t - log p_s)
    #            = sum_c p_t*(yt_shift - ys_shift) + (log z_s - log z_t)
    # (valid because sum_c p_t == 1; avoids materializing log_p_t / log_p_s).
    kl_rows = (jnp.sum(p_t * (yt_shift - ys_shift), axis=1, keepdims=True)
               + (log_z_s - log_z_t))

    # Mask rows of the (possibly padded) last tile: padded rows hold garbage.
    row = i * tile_b + jax.lax.broadcasted_iota(jnp.int32, (tile_b, 1), 0)
    kl_rows = jnp.where(row < batch, kl_rows, jnp.float32(0.0))

    acc_ref[0] += jnp.sum(kl_rows)

    @pl.when(i == pl.num_programs(0) - 1)
    def _finalize():
        # F.kl_div(log_p_s, p_t, reduction='batchmean') * T**2
        out_ref[0] = acc_ref[0] * jnp.float32(T * T / batch)


def _choose_tile_b(B: int, C: int, itemsize: int,
                   budget_bytes: int = 16 * 1024 * 1024) -> int:
    """Largest batch tile such that 2 inputs x 2 pipeline buffers fit budget."""
    max_rows = max(1, budget_bytes // (4 * C * itemsize))
    if B <= max_rows:
        return B                        # full-extent block: always legal
    return max(8, (max_rows // 8) * 8)  # multiple of 8 for the sublane rule


def distill_kl(y_s: jax.Array, y_t: jax.Array, T: float, *,
               tile_b: int | None = None) -> jax.Array:
    """KD loss (Hinton distillation), single batch-tiled Pallas kernel."""
    assert y_s.shape == y_t.shape and y_s.ndim == 2
    B, C = y_s.shape
    if tile_b is None:
        tile_b = _choose_tile_b(B, C, jnp.dtype(y_s.dtype).itemsize)
    grid = (pl.cdiv(B, tile_b),)

    kernel = functools.partial(_distill_kl_kernel, T=float(T), batch=B,
                               tile_b=tile_b)
    out = pl.pallas_call(
        kernel,
        out_shape=jax.ShapeDtypeStruct((1,), jnp.float32),
        grid_spec=pltpu.PrefetchScalarGridSpec(
            num_scalar_prefetch=0,
            grid=grid,
            in_specs=[
                pl.BlockSpec((tile_b, C), lambda i: (i, 0)),
                pl.BlockSpec((tile_b, C), lambda i: (i, 0)),
            ],
            out_specs=pl.BlockSpec(memory_space=pltpu.MemorySpace.SMEM),
            scratch_shapes=[pltpu.SMEM((1,), jnp.float32)],
        ),
        compiler_params=pltpu.CompilerParams(
            # Serial reduction over batch tiles into one SMEM accumulator.
            dimension_semantics=("arbitrary",),
            vmem_limit_bytes=32 * 1024 * 1024,
        ),
    )(y_s, y_t)
    return out[0]


def _reference_distill_kl(y_s, y_t, T):
    # Pure-JAX reference for a sanity check.
    log_p_s = jax.nn.log_softmax(y_s / T, axis=1)
    p_t = jax.nn.softmax(y_t / T, axis=1)
    log_p_t = jax.nn.log_softmax(y_t / T, axis=1)
    return jnp.sum(p_t * (log_p_t - log_p_s)) / y_s.shape[0] * (T ** 2)


if __name__ == "__main__":
    # Small shapes consistent with the module: CIFAR-100-style logits.
    T = 4.0
    key = jax.random.PRNGKey(0)
    k1, k2, k3, k4 = jax.random.split(key, 4)

    # Case 1: B=8, C=100 (single tile).
    B, C = 8, 100
    y_s = jax.random.normal(k1, (B, C), dtype=jnp.float32)
    y_t = jax.random.normal(k2, (B, C), dtype=jnp.float32)
    loss = distill_kl(y_s, y_t, T)
    jax.block_until_ready(loss)
    ref = _reference_distill_kl(y_s, y_t, T)
    assert jnp.allclose(loss, ref, rtol=1e-5, atol=1e-6), (loss, ref)

    # Case 2: batch not divisible by the tile -> exercises the multi-step
    # serial accumulator and the padded-row mask.
    B2 = 20
    y_s2 = jax.random.normal(k3, (B2, C), dtype=jnp.float32)
    y_t2 = jax.random.normal(k4, (B2, C), dtype=jnp.float32)
    loss2 = distill_kl(y_s2, y_t2, T, tile_b=8)
    jax.block_until_ready(loss2)
    ref2 = _reference_distill_kl(y_s2, y_t2, T)
    assert jnp.allclose(loss2, ref2, rtol=1e-5, atol=1e-6), (loss2, ref2)

    # Case 3: bf16 logits from HBM (kernel still accumulates in f32) — this is
    # the recommended caller contract for the bandwidth-bound loss.
    y_s3 = y_s2.astype(jnp.bfloat16)
    y_t3 = y_t2.astype(jnp.bfloat16)
    loss3 = distill_kl(y_s3, y_t3, T, tile_b=8)
    jax.block_until_ready(loss3)
    ref3 = _reference_distill_kl(y_s3.astype(jnp.float32),
                                 y_t3.astype(jnp.float32), T)
    assert jnp.allclose(loss3, ref3, rtol=1e-4, atol=1e-5), (loss3, ref3)

    # TODO(synk): if C ever grows to vocab scale, tile C with a two-pass /
    # online log-sum-exp and -inf lane padding (current math assumes full rows).
    print("KERNEL_OK")
</pallas_src>

<mosaic_0001>
module attributes {stable_mosaic.version = 11 : i64} {
  func.func @_distill_kl_kernel(%arg0: i32, %arg1: memref<8x100xf32, #tpu.memory_space<vmem>>, %arg2: memref<8x100xf32, #tpu.memory_space<vmem>>, %arg3: memref<1xf32, #tpu.memory_space<smem>>, %arg4: memref<1xf32, #tpu.memory_space<smem>>) attributes {dimension_semantics = [#tpu.dimension_semantics<arbitrary>], iteration_bounds = array<i64: 1>, scalar_prefetch = 0 : i64, scratch_operands = 1 : i64, tpu.core_type = #tpu.core_type<tc>, window_params = [{transform_indices = @transform_0, window_bounds = array<i64: 8, 100>}, {transform_indices = @transform_1, window_bounds = array<i64: 8, 100>}, {transform_indices = @transform_2, window_bounds = array<i64: 1>}]} {
    %c0_i32 = arith.constant 0 : i32
    %0 = arith.cmpi eq, %arg0, %c0_i32 : i32
    %1 = arith.extui %0 : i1 to i32
    %c0_i32_0 = arith.constant 0 : i32
    %2 = arith.cmpi ne, %1, %c0_i32_0 : i32
    scf.if %2 {
      %cst_17 = arith.constant 0.000000e+00 : f32
      %c0_18 = arith.constant 0 : index
      %52 = memref.load %arg4[%c0_18] : memref<1xf32, #tpu.memory_space<smem>>
      memref.store %cst_17, %arg4[%c0_18] : memref<1xf32, #tpu.memory_space<smem>>
    } else {
    }
    %c0 = arith.constant 0 : index
    %c0_1 = arith.constant 0 : index
    %3 = vector.load %arg1[%c0, %c0_1] : memref<8x100xf32, #tpu.memory_space<vmem>>, vector<8x100xf32>
    %cst = arith.constant 2.500000e-01 : f32
    %4 = vector.broadcast %cst : f32 to vector<8x100xf32>
    %5 = arith.mulf %3, %4 : vector<8x100xf32>
    %cst_2 = arith.constant dense<0xFF800000> : vector<8xf32>
    %6 = vector.multi_reduction <maximumf>, %5, %cst_2 [1] : vector<8x100xf32> to vector<8xf32>
    %7 = vector.shape_cast %6 : vector<8xf32> to vector<8x1xf32>
    %8 = vector.broadcast %7 : vector<8x1xf32> to vector<8x100xf32>
    %9 = arith.subf %5, %8 : vector<8x100xf32>
    %10 = math.exp %9 : vector<8x100xf32>
    %cst_3 = arith.constant dense<0.000000e+00> : vector<8xf32>
    %11 = vector.multi_reduction <add>, %10, %cst_3 [1] : vector<8x100xf32> to vector<8xf32>
    %12 = vector.shape_cast %11 : vector<8xf32> to vector<8x1xf32>
    %13 = math.log %12 : vector<8x1xf32>
    %c0_4 = arith.constant 0 : index
    %c0_5 = arith.constant 0 : index
    %14 = vector.load %arg2[%c0_4, %c0_5] : memref<8x100xf32, #tpu.memory_space<vmem>>, vector<8x100xf32>
    %cst_6 = arith.constant 2.500000e-01 : f32
    %15 = vector.broadcast %cst_6 : f32 to vector<8x100xf32>
    %16 = arith.mulf %14, %15 : vector<8x100xf32>
    %cst_7 = arith.constant dense<0xFF800000> : vector<8xf32>
    %17 = vector.multi_reduction <maximumf>, %16, %cst_7 [1] : vector<8x100xf32> to vector<8xf32>
    %18 = vector.shape_cast %17 : vector<8xf32> to vector<8x1xf32>
    %19 = vector.broadcast %18 : vector<8x1xf32> to vector<8x100xf32>
    %20 = arith.subf %16, %19 : vector<8x100xf32>
    %21 = math.exp %20 : vector<8x100xf32>
    %cst_8 = arith.constant dense<0.000000e+00> : vector<8xf32>
    %22 = vector.multi_reduction <add>, %21, %cst_8 [1] : vector<8x100xf32> to vector<8xf32>
    %23 = vector.shape_cast %22 : vector<8xf32> to vector<8x1xf32>
    %24 = tpu.reciprocal %23 : vector<8x1xf32> -> vector<8x1xf32>
    %25 = vector.broadcast %24 : vector<8x1xf32> to vector<8x100xf32>
    %26 = arith.mulf %21, %25 : vector<8x100xf32>
    %27 = math.log %23 : vector<8x1xf32>
    %28 = arith.subf %20, %9 : vector<8x100xf32>
    %29 = arith.mulf %26, %28 : vector<8x100xf32>
    %cst_9 = arith.constant dense<0.000000e+00> : vector<8xf32>
    %30 = vector.multi_reduction <add>, %29, %cst_9 [1] : vector<8x100xf32> to vector<8xf32>
    %31 = vector.shape_cast %30 : vector<8xf32> to vector<8x1xf32>
    %32 = arith.subf %13, %27 : vector<8x1xf32>
    %33 = arith.addf %31, %32 : vector<8x1xf32>
    %c8_i32 = arith.constant 8 : i32
    %34 = arith.muli %arg0, %c8_i32 : i32
    %35 = tpu.iota {dimensions = array<i32: 0>} : vector<8x1xi32>
    %36 = vector.broadcast %34 : i32 to vector<8x1xi32>
    %37 = arith.addi %36, %35 : vector<8x1xi32>
    %c8_i32_10 = arith.constant 8 : i32
    %38 = vector.broadcast %c8_i32_10 : i32 to vector<8x1xi32>
    %39 = arith.cmpi slt, %37, %38 : vector<8x1xi32>
    %cst_11 = arith.constant 0.000000e+00 : f32
    %40 = vector.broadcast %cst_11 : f32 to vector<8x1xf32>
    %41 = arith.select %39, %33, %40 : vector<8x1xi1>, vector<8x1xf32>
    %c0_12 = arith.constant 0 : index
    %42 = memref.load %arg4[%c0_12] : memref<1xf32, #tpu.memory_space<smem>>
    %43 = vector.shape_cast %41 : vector<8x1xf32> to vector<1x8x1xf32>
    %cst_13 = arith.constant dense<0.000000e+00> : vector<1xf32>
    %44 = vector.multi_reduction <add>, %43, %cst_13 [1, 2] : vector<1x8x1xf32> to vector<1xf32>
    %45 = vector.shape_cast %44 : vector<1xf32> to vector<1x1x1xf32>
    %46 = vector.extract %45[0, 0, 0] : f32 from vector<1x1x1xf32>
    %47 = arith.addf %42, %46 : f32
    %c0_14 = arith.constant 0 : index
    %48 = memref.load %arg4[%c0_14] : memref<1xf32, #tpu.memory_space<smem>>
    memref.store %47, %arg4[%c0_14] : memref<1xf32, #tpu.memory_space<smem>>
    %c0_i32_15 = arith.constant 0 : i32
    %49 = arith.cmpi eq, %arg0, %c0_i32_15 : i32
    %50 = arith.extui %49 : i1 to i32
    %c0_i32_16 = arith.constant 0 : i32
    %51 = arith.cmpi ne, %50, %c0_i32_16 : i32
    scf.if %51 {
      %c0_17 = arith.constant 0 : index
      %52 = memref.load %arg4[%c0_17] : memref<1xf32, #tpu.memory_space<smem>>
      %cst_18 = arith.constant 2.000000e+00 : f32
      %53 = arith.mulf %52, %cst_18 : f32
      %c0_19 = arith.constant 0 : index
      %54 = memref.load %arg3[%c0_19] : memref<1xf32, #tpu.memory_space<smem>>
      memref.store %53, %arg3[%c0_19] : memref<1xf32, #tpu.memory_space<smem>>
    } else {
    }
    return
  }
  func.func @transform_0(%arg0: i32) -> (i32, i32) {
    %c0_i32 = arith.constant 0 : i32
    %c0_i32_0 = arith.constant 0 : i32
    return %arg0, %c0_i32 : i32, i32
  }
  func.func @transform_1(%arg0: i32) -> (i32, i32) {
    %c0_i32 = arith.constant 0 : i32
    %c0_i32_0 = arith.constant 0 : i32
    return %arg0, %c0_i32 : i32, i32
  }
  func.func @transform_2(%arg0: i32) -> i32 {
    %c0_i32 = arith.constant 0 : i32
    %c0_i32_0 = arith.constant 0 : i32
    return %c0_i32 : i32
  }
}

</mosaic_0001>

<llo_original>
// kernel: tpu_custom_call.1
$region0: #{tpu_custom_call.1}
  #allocation0 [shape = 'u32[]', space=smem, size = 0x4, offset = 0x4, fixed_abs, tag = 'smem constant byte address 0x4 - core index']
  #allocation1 [shape = 'u32[72,128]{1,0:T(1,128)}', space=vmem, size = 0x9000, scoped, tag = 'internal scratch']
  #allocation2 [shape = 'f32[1]{0:T(128)}', space=smem, size = 0x200, scoped, tag = 'scratch operand']
  %s0 = inlined_call_operand.hbm [shape: f32[8,100], index: 0, kind: input, shape index: {}]
  %s1 = inlined_call_operand.hbm [shape: f32[8,100], index: 1, kind: input, shape index: {}]
  %s2 = inlined_call_operand.hbm [shape: f32[1], index: 2, kind: output, shape index: {}]
  %s3 = sld [smem:[#allocation0]]
  $region34: #{tpu_custom_call.1} parent=0
    _
  %s5 = ssub.s32 1, %s3
  %s6 = scalar_select 0, %s5, %s3
  $region1: #{tpu_custom_call.1} parent=0
    #allocation3 [shape = 'u8[4096]{0}', space=vmem, size = 0x1000, scoped, tag = 'input window, operand 0, single buffered']
    #allocation4 [shape = 's32[1]{0}', space=sflag, size = 0x4, scoped, tag = 'scoped memory for tpu_custom_call.1']
    #allocation5 [shape = 's32[1]{0}', space=sflag, size = 0x4, scoped, tag = 'scoped memory for tpu_custom_call.1']
    #allocation6 [shape = 'u8[4096]{0}', space=vmem, size = 0x1000, scoped, tag = 'input window, operand 1, single buffered']
    #allocation7 [shape = 's32[1]{0}', space=sflag, size = 0x4, scoped, tag = 'scoped memory for tpu_custom_call.1']
    #allocation8 [shape = 'u8[512]{0}', space=smem, size = 0x200, scoped, tag = 'output window, operand 0, single buffered']
    %7 = vsyncpa [#allocation4], 0
    %8 = vsyncpa [#allocation7], 0
    %9 = vsyncpa [#allocation5], 0
    // Predicated region
    $region2: #{tpu_custom_call.1} parent=1 // pred_check
      _
    $region3: #{tpu_custom_call.1} parent=1 // pred_check_branch
      %11 = sbr.rel (0) target = $region5
    $region4: #{tpu_custom_call.1} parent=1 // pred_region
      %13 = vsyncadd [#allocation4], 0
      %s15 = sshll.u32 %s0, 4
      %s16 = int_to_ptr.hbm [resolvable:$true] %s15
      %s17 = sshll.u32 [#allocation3], 4
      %s18 = int_to_ptr.vmem [resolvable:$true] %s17
      %20 = dma.hbm_to_vmem [thread:$0]  %s16, 128, %s18, [#allocation4]
    $region5: #{tpu_custom_call.1} parent=1 // pred_fallthru
      _
    // Predicated region
    $region6: #{tpu_custom_call.1} parent=1 // pred_check
      _
    $region7: #{tpu_custom_call.1} parent=1 // pred_check_branch
      %22 = sbr.rel (0) target = $region9
    $region8: #{tpu_custom_call.1} parent=1 // pred_region
      %24 = vsyncadd [#allocation7], 0
      %s26 = sshll.u32 %s1, 4
      %s27 = int_to_ptr.hbm [resolvable:$true] %s26
      %s28 = sshll.u32 [#allocation6], 4
      %s29 = int_to_ptr.vmem [resolvable:$true] %s28
      %31 = dma.hbm_to_vmem [thread:$0]  %s27, 128, %s29, [#allocation7]
    $region9: #{tpu_custom_call.1} parent=1 // pred_fallthru
      _
    // Predicated region
    $region10: #{tpu_custom_call.1} parent=1 // pred_check
      _
    $region11: #{tpu_custom_call.1} parent=1 // pred_check_branch
      %33 = sbr.rel (0) target = $region13
    $region12: #{tpu_custom_call.1} parent=1 // pred_region
      %35 = dma.done [#allocation4], 128
    $region13: #{tpu_custom_call.1} parent=1 // pred_fallthru
      _
    // Predicated region
    $region14: #{tpu_custom_call.1} parent=1 // pred_check
      _
    $region15: #{tpu_custom_call.1} parent=1 // pred_check_branch
      %37 = sbr.rel (0) target = $region17
    $region16: #{tpu_custom_call.1} parent=1 // pred_region
      %39 = dma.done [#allocation7], 128
    $region17: #{tpu_custom_call.1} parent=1 // pred_fallthru
      _
    %p40 = scmp.eq.s32.totalorder 0, 0
    // Predicated region
    $region18: #{tpu_custom_call.1} parent=1 // pred_check
      %p41 = pneg %p40
    $region19: #{tpu_custom_call.1} parent=1 // pred_check_branch
      %43 = sbr.rel (%p41) target = $region21
    $region20: #{tpu_custom_call.1} parent=1 // pred_region
      %s44 = scalar_lea.smem [#allocation2], 0
      %45 = sst [smem:[%s44]] 0.0
    $region21: #{tpu_custom_call.1} parent=1 // pred_fallthru
      _
    %v46 = vld [vmem:[#allocation3] sm:$0xff]
    %v47 = vmul.f32 %v46, 0.25
    %vm48 = vcmask 818176
    %v49 = vsel %vm48, %v47, -inf
    %50 = vmax.xlane.f32.xlu0 %v49
    %v51 = vpop.xlane.xlu0 %50
    %v52 = vsub.f32 %v47, %v51
    %v53 = vmul.f32 %v52, 1.442695
    %v54 = vpow.pop %v53
    %v55 = vsel %vm48, %v54, 0.0
    %56 = vadd.xlane.f32.xlu0 %v55
    %v57 = vpop.xlane.xlu0 %56
    %v58 = vlog2.pop %v57
    %v59 = vmul.f32 %v58, 0.6931472
    %v60 = vld [vmem:[#allocation6] sm:$0xff]
    %v61 = vmul.f32 %v60, 0.25
    %v62 = vsel %vm48, %v61, -inf
    %63 = vmax.xlane.f32.xlu0 %v62
    %v64 = vpop.xlane.xlu0 %63
    %v65 = vsub.f32 %v61, %v64
    %v66 = vmul.f32 %v65, 1.442695
    %v67 = vpow.pop %v66
    %v68 = vsel %vm48, %v67, 0.0
    %69 = vadd.xlane.f32.xlu0 %v68
    %v70 = vpop.xlane.xlu0 %69
    %v71 = vrcp.pop %v70
    %v72 = vmul.f32 %v70, %v71
    %v73 = vsub.f32 1.0, %v72
    %v74 = vmul.f32 %v71, %v73
    %v75 = vadd.f32 %v71, %v74
    %vm76 = vweird.f32 %v70
    %vm77 = vweird.f32 %v71
    %vm78 = vmor %vm76, %vm77
    %v79 = vsel %vm78, %v71, %v75
    %v80 = vand.u32 2147483647, %v70
    %vm81 = vcmp.eq.f32.partialorder %v80, 8.507059e+37
    %v82 = vand.u32 %v70, 2147483648
    %v83 = vor.u32 1.1754944e-38, %v82
    %v84 = vsel %vm81, %v83, %v79
    %v85 = vmul.f32 %v67, %v84
    %v86 = vlog2.pop %v70
    %v87 = vmul.f32 %v86, 0.6931472
    %v88 = vsub.f32 %v65, %v52
    %v89 = vmul.f32 %v85, %v88
    %v90 = vsel %vm48, %v89, 0.0
    %91 = vadd.xlane.f32.xlu0 %v90
    %v92 = vpop.xlane.xlu0 %91
    %v93 = vsub.f32 %v59, %v87
    %v94 = vadd.f32 %v92, %v93
    %s95 = smul.u32 0, 8
    %v96 = vlaneseq
    %v97 = vshrl.u32 %v96, 7
    %v98 = vstv %s95
    %v99 = vadd.s32 %v98, %v97
    %vm100 = vcmp.lt.s32.totalorder %v99, 8
    %v101 = vsel %vm100, %v94, 0.0
    %s102 = sld [smem:[#allocation2]]
    %vm103 = vcmask 7168
    %v104 = vsel %vm103, %v101, 0.0
    %105 = vadd.xlane.f32.xlu0 %v104
    %v106 = vpop.xlane.xlu0 %105
    %v107 = vrot.slane %v106, 4
    %v108 = vadd.f32 %v106, %v107
    %v109 = vrot.slane %v108, 2
    %v110 = vadd.f32 %v108, %v109
    %v111 = vrot.slane %v110, 1
    %v112 = vadd.f32 %v110, %v111
    %s113 = vtos %v112
    %s114 = sadd.f32 %s102, %s113
    %s115 = scalar_lea.smem [#allocation2], 0
    %116 = sst [smem:[%s115]] %s114
    // Predicated region
    $region22: #{tpu_custom_call.1} parent=1 // pred_check
      %p117 = pneg %p40
    $region23: #{tpu_custom_call.1} parent=1 // pred_check_branch
      %119 = sbr.rel (%p117) target = $region25
    $region24: #{tpu_custom_call.1} parent=1 // pred_region
      %s120 = sld [smem:[#allocation2]]
      %s121 = smul.f32 %s120, 2.0
      %s122 = scalar_lea.smem [#allocation8], 0
      %123 = sst [smem:[%s122]] %s121
    $region25: #{tpu_custom_call.1} parent=1 // pred_fallthru
      _
    // Predicated region
    $region26: #{tpu_custom_call.1} parent=1 // pred_check
      _
    $region27: #{tpu_custom_call.1} parent=1 // pred_check_branch
      %125 = sbr.rel (0) target = $region29
    $region28: #{tpu_custom_call.1} parent=1 // pred_region
      %127 = vsyncadd [#allocation5], 0
      %s129 = sshll.u32 %s2, 4
      %s130 = int_to_ptr.hbm [resolvable:$true] %s129
      %132 = dma.smem_to_hbm [#allocation8], 16, %s130, [#allocation5]
    $region29: #{tpu_custom_call.1} parent=1 // pred_fallthru
      _
    // Predicated region
    $region30: #{tpu_custom_call.1} parent=1 // pred_check
      _
    $region31: #{tpu_custom_call.1} parent=1 // pred_check_branch
      %134 = sbr.rel (0) target = $region33
    $region32: #{tpu_custom_call.1} parent=1 // pred_region
      %136 = dma.done [#allocation5], 16
    $region33: #{tpu_custom_call.1} parent=1 // pred_fallthru
      _
    %137 = sfence
    %138 = vsyncpa [#allocation4], 1
    %139 = vsyncpa [#allocation7], 1
    %140 = vsyncpa [#allocation5], 1

</llo_original>
